<compile_context>
chip_gen: v5e
topology: v5e:2x2
jax: 0.10.0
libtpu: 0.0.40
codegen_flags: <defaults>
</compile_context>

<pallas_src>
import jax
import jax.numpy as jnp
from jax.experimental import pallas as pl
from jax.experimental.pallas import tpu as pltpu


def _round_up(x: int, m: int) -> int:
    return ((x + m - 1) // m) * m


def mlp_kernel(x_ref, w1_ref, b1_ref, w2_ref, b2_ref, w3_ref, b3_ref, o_ref):
    # Layer 1: bf16 x bf16 -> f32 accumulate on the MXU, bias + ReLU on VPU.
    h1 = jnp.dot(x_ref[...], w1_ref[...], preferred_element_type=jnp.float32)
    h1 = jnp.maximum(h1 + b1_ref[...], 0.0)          # b1 is (1, H1p), broadcasts

    # Layer 2 (cast activation back to bf16 for the MXU operand).
    h2 = jnp.dot(h1.astype(w2_ref.dtype), w2_ref[...],
                 preferred_element_type=jnp.float32)
    h2 = jnp.maximum(h2 + b2_ref[...], 0.0)

    # Layer 3 (no activation).
    out = jnp.dot(h2.astype(w3_ref.dtype), w3_ref[...],
                  preferred_element_type=jnp.float32)
    o_ref[...] = (out + b3_ref[...]).astype(o_ref.dtype)


def classifier_forward(x, w1, b1, w2, b2, w3, b3):
    """Fused 3-layer MLP forward pass.

    x:  [B, D_in]  float32
    w1: [D_in, H1], b1: [1, H1]
    w2: [H1, H2],   b2: [1, H2]
    w3: [H2, D_out], b3: [1, D_out]
    returns [B, D_out] float32
    """
    B, D_in = x.shape
    H1 = w1.shape[1]
    H2 = w2.shape[1]
    D_out = w3.shape[1]
    out_dtype = x.dtype

    # Lane-dense padding of the narrow feature dims.
    H1p = _round_up(H1, 128)
    H2p = _round_up(H2, 128)
    D_outp = _round_up(D_out, 128)

    # Batch tiling: large tile to amortize per-step overhead, capped vs VMEM.
    tm = min(512, _round_up(B, 8))
    B_pad = _round_up(B, tm)

    # Wrapper-side padding (zeros keep padded lanes exactly zero through ReLU)
    # and bf16 casts for MXU operands. Biases remain f32.
    bf16 = jnp.bfloat16
    x_p = x
    if B_pad != B:
        x_p = jnp.pad(x_p, ((0, B_pad - B), (0, 0)))
    x_p = x_p.astype(bf16)

    w1_p = jnp.pad(w1, ((0, 0), (0, H1p - H1))).astype(bf16)
    b1_p = jnp.pad(b1, ((0, 0), (0, H1p - H1)))
    w2_p = jnp.pad(w2, ((0, H1p - H1), (0, H2p - H2))).astype(bf16)
    b2_p = jnp.pad(b2, ((0, 0), (0, H2p - H2)))
    w3_p = jnp.pad(w3, ((0, H2p - H2), (0, D_outp - D_out))).astype(bf16)
    b3_p = jnp.pad(b3, ((0, 0), (0, D_outp - D_out)))

    grid = (B_pad // tm,)

    # x / out are tiled by batch rows; weights & biases use constant
    # index_maps so they stay resident in VMEM across all grid steps.
    resident = lambda shape: pl.BlockSpec(shape, lambda i: (0, 0))

    out_padded = pl.pallas_call(
        mlp_kernel,
        out_shape=jax.ShapeDtypeStruct((B_pad, D_outp), out_dtype),
        grid=grid,
        in_specs=[
            pl.BlockSpec((tm, D_in), lambda i: (i, 0)),   # x rows
            resident((D_in, H1p)), resident((1, H1p)),    # W1, b1
            resident((H1p, H2p)), resident((1, H2p)),     # W2, b2
            resident((H2p, D_outp)), resident((1, D_outp)),  # W3, b3
        ],
        out_specs=pl.BlockSpec((tm, D_outp), lambda i: (i, 0)),
        compiler_params=pltpu.CompilerParams(
            dimension_semantics=("parallel",)),
    )(x_p, w1_p, b1_p, w2_p, b2_p, w3_p, b3_p)

    # Slice away batch / lane padding outside the kernel.
    return out_padded[:B, :D_out]


def init_params(key, D_in, H1, H2, D_out):
    """Deterministic PyTorch-style init: U(-1/sqrt(fan_in), +1/sqrt(fan_in)).

    Weights are stored as [in, out] (transposed vs. nn.Linear's [out, in]).
    """
    keys = jax.random.split(key, 6)

    def layer(kw, kb, fan_in, fan_out):
        bound = 1.0 / jnp.sqrt(fan_in)
        w = jax.random.uniform(kw, (fan_in, fan_out), jnp.float32, -bound, bound)
        b = jax.random.uniform(kb, (1, fan_out), jnp.float32, -bound, bound)
        return w, b

    w1, b1 = layer(keys[0], keys[1], D_in, H1)
    w2, b2 = layer(keys[2], keys[3], H1, H2)
    w3, b3 = layer(keys[4], keys[5], H2, D_out)
    return w1, b1, w2, b2, w3, b3


if __name__ == "__main__":
    # Small shapes consistent with an MLP classifier: batch=8, D_in=64,
    # H1=32, H2=32, D_out=16.
    B, D_in, H1, H2, D_out = 8, 64, 32, 32, 16

    key = jax.random.PRNGKey(0)
    k_x, k_p = jax.random.split(key)
    x = jax.random.normal(k_x, (B, D_in), jnp.float32)
    w1, b1, w2, b2, w3, b3 = init_params(k_p, D_in, H1, H2, D_out)

    out = classifier_forward(x, w1, b1, w2, b2, w3, b3)
    out = jax.block_until_ready(out)

    # Pure-f32 JAX reference of the same math (kernel uses bf16 MXU operands
    # with f32 accumulation, hence the slightly loose tolerance).
    ref = jnp.maximum(x @ w1 + b1, 0.0)
    ref = jnp.maximum(ref @ w2 + b2, 0.0)
    ref = ref @ w3 + b3

    assert out.shape == (B, D_out)
    assert out.dtype == x.dtype
    assert jnp.allclose(out, ref, atol=2e-2, rtol=2e-2), (
        f"max abs err = {jnp.max(jnp.abs(out - ref))}")

    print("KERNEL_OK")
</pallas_src>

<mosaic_0001>
module attributes {stable_mosaic.version = 11 : i64} {
  func.func @mlp_kernel(%arg0: i32, %arg1: memref<8x64xbf16, #tpu.memory_space<vmem>>, %arg2: memref<64x128xbf16, #tpu.memory_space<vmem>>, %arg3: memref<1x128xf32, #tpu.memory_space<vmem>>, %arg4: memref<128x128xbf16, #tpu.memory_space<vmem>>, %arg5: memref<1x128xf32, #tpu.memory_space<vmem>>, %arg6: memref<128x128xbf16, #tpu.memory_space<vmem>>, %arg7: memref<1x128xf32, #tpu.memory_space<vmem>>, %arg8: memref<8x128xf32, #tpu.memory_space<vmem>>) attributes {dimension_semantics = [#tpu.dimension_semantics<parallel>], iteration_bounds = array<i64: 1>, scalar_prefetch = 0 : i64, scratch_operands = 0 : i64, tpu.core_type = #tpu.core_type<tc>, window_params = [{transform_indices = @transform_0, window_bounds = array<i64: 8, 64>}, {pipeline_mode = #tpu.pipeline_mode<synchronous>, transform_indices = @transform_1, window_bounds = array<i64: 64, 128>}, {pipeline_mode = #tpu.pipeline_mode<synchronous>, transform_indices = @transform_2, window_bounds = array<i64: 1, 128>}, {pipeline_mode = #tpu.pipeline_mode<synchronous>, transform_indices = @transform_3, window_bounds = array<i64: 128, 128>}, {pipeline_mode = #tpu.pipeline_mode<synchronous>, transform_indices = @transform_4, window_bounds = array<i64: 1, 128>}, {pipeline_mode = #tpu.pipeline_mode<synchronous>, transform_indices = @transform_5, window_bounds = array<i64: 128, 128>}, {pipeline_mode = #tpu.pipeline_mode<synchronous>, transform_indices = @transform_6, window_bounds = array<i64: 1, 128>}, {transform_indices = @transform_7, window_bounds = array<i64: 8, 128>}]} {
    %c0 = arith.constant 0 : index
    %c0_0 = arith.constant 0 : index
    %0 = vector.load %arg1[%c0, %c0_0] : memref<8x64xbf16, #tpu.memory_space<vmem>>, vector<8x64xbf16>
    %c0_1 = arith.constant 0 : index
    %c0_2 = arith.constant 0 : index
    %1 = vector.load %arg2[%c0_1, %c0_2] : memref<64x128xbf16, #tpu.memory_space<vmem>>, vector<64x128xbf16>
    %cst = arith.constant dense<0.000000e+00> : vector<8x128xf32>
    %2 = tpu.matmul %0, %1, %cst {dimension_numbers = #tpu.dot_dimension_numbers<[1], [0], [0], [1], [0, 0, 1, 1], [], []>} : vector<8x64xbf16>, vector<64x128xbf16>, vector<8x128xf32> -> vector<8x128xf32>
    %c0_3 = arith.constant 0 : index
    %c0_4 = arith.constant 0 : index
    %3 = vector.load %arg3[%c0_3, %c0_4] : memref<1x128xf32, #tpu.memory_space<vmem>>, vector<1x128xf32>
    %4 = vector.broadcast %3 : vector<1x128xf32> to vector<8x128xf32>
    %5 = arith.addf %2, %4 : vector<8x128xf32>
    %cst_5 = arith.constant 0.000000e+00 : f32
    %6 = vector.broadcast %cst_5 : f32 to vector<8x128xf32>
    %7 = arith.maximumf %5, %6 : vector<8x128xf32>
    %8 = arith.truncf %7 : vector<8x128xf32> to vector<8x128xbf16>
    %c0_6 = arith.constant 0 : index
    %c0_7 = arith.constant 0 : index
    %9 = vector.load %arg4[%c0_6, %c0_7] : memref<128x128xbf16, #tpu.memory_space<vmem>>, vector<128x128xbf16>
    %cst_8 = arith.constant dense<0.000000e+00> : vector<8x128xf32>
    %10 = tpu.matmul %8, %9, %cst_8 {dimension_numbers = #tpu.dot_dimension_numbers<[1], [0], [0], [1], [0, 0, 1, 1], [], []>} : vector<8x128xbf16>, vector<128x128xbf16>, vector<8x128xf32> -> vector<8x128xf32>
    %c0_9 = arith.constant 0 : index
    %c0_10 = arith.constant 0 : index
    %11 = vector.load %arg5[%c0_9, %c0_10] : memref<1x128xf32, #tpu.memory_space<vmem>>, vector<1x128xf32>
    %12 = vector.broadcast %11 : vector<1x128xf32> to vector<8x128xf32>
    %13 = arith.addf %10, %12 : vector<8x128xf32>
    %cst_11 = arith.constant 0.000000e+00 : f32
    %14 = vector.broadcast %cst_11 : f32 to vector<8x128xf32>
    %15 = arith.maximumf %13, %14 : vector<8x128xf32>
    %16 = arith.truncf %15 : vector<8x128xf32> to vector<8x128xbf16>
    %c0_12 = arith.constant 0 : index
    %c0_13 = arith.constant 0 : index
    %17 = vector.load %arg6[%c0_12, %c0_13] : memref<128x128xbf16, #tpu.memory_space<vmem>>, vector<128x128xbf16>
    %cst_14 = arith.constant dense<0.000000e+00> : vector<8x128xf32>
    %18 = tpu.matmul %16, %17, %cst_14 {dimension_numbers = #tpu.dot_dimension_numbers<[1], [0], [0], [1], [0, 0, 1, 1], [], []>} : vector<8x128xbf16>, vector<128x128xbf16>, vector<8x128xf32> -> vector<8x128xf32>
    %c0_15 = arith.constant 0 : index
    %c0_16 = arith.constant 0 : index
    %19 = vector.load %arg7[%c0_15, %c0_16] : memref<1x128xf32, #tpu.memory_space<vmem>>, vector<1x128xf32>
    %20 = vector.broadcast %19 : vector<1x128xf32> to vector<8x128xf32>
    %21 = arith.addf %18, %20 : vector<8x128xf32>
    %c0_17 = arith.constant 0 : index
    %c0_18 = arith.constant 0 : index
    %22 = vector.load %arg8[%c0_17, %c0_18] : memref<8x128xf32, #tpu.memory_space<vmem>>, vector<8x128xf32>
    tpu.vector_store %arg8[%c0_17, %c0_18], %21 {strides = array<i32>} : memref<8x128xf32, #tpu.memory_space<vmem>>, vector<8x128xf32>,
    return
  }
  func.func @transform_0(%arg0: i32) -> (i32, i32) {
    %c0_i32 = arith.constant 0 : i32
    %c0_i32_0 = arith.constant 0 : i32
    return %arg0, %c0_i32 : i32, i32
  }
  func.func @transform_1(%arg0: i32) -> (i32, i32) {
    %c0_i32 = arith.constant 0 : i32
    %c0_i32_0 = arith.constant 0 : i32
    %c0_i32_1 = arith.constant 0 : i32
    return %c0_i32, %c0_i32_0 : i32, i32
  }
  func.func @transform_2(%arg0: i32) -> (i32, i32) {
    %c0_i32 = arith.constant 0 : i32
    %c0_i32_0 = arith.constant 0 : i32
    %c0_i32_1 = arith.constant 0 : i32
    return %c0_i32, %c0_i32_0 : i32, i32
  }
  func.func @transform_3(%arg0: i32) -> (i32, i32) {
    %c0_i32 = arith.constant 0 : i32
    %c0_i32_0 = arith.constant 0 : i32
    %c0_i32_1 = arith.constant 0 : i32
    return %c0_i32, %c0_i32_0 : i32, i32
  }
  func.func @transform_4(%arg0: i32) -> (i32, i32) {
    %c0_i32 = arith.constant 0 : i32
    %c0_i32_0 = arith.constant 0 : i32
    %c0_i32_1 = arith.constant 0 : i32
    return %c0_i32, %c0_i32_0 : i32, i32
  }
  func.func @transform_5(%arg0: i32) -> (i32, i32) {
    %c0_i32 = arith.constant 0 : i32
    %c0_i32_0 = arith.constant 0 : i32
    %c0_i32_1 = arith.constant 0 : i32
    return %c0_i32, %c0_i32_0 : i32, i32
  }
  func.func @transform_6(%arg0: i32) -> (i32, i32) {
    %c0_i32 = arith.constant 0 : i32
    %c0_i32_0 = arith.constant 0 : i32
    %c0_i32_1 = arith.constant 0 : i32
    return %c0_i32, %c0_i32_0 : i32, i32
  }
  func.func @transform_7(%arg0: i32) -> (i32, i32) {
    %c0_i32 = arith.constant 0 : i32
    %c0_i32_0 = arith.constant 0 : i32
    return %arg0, %c0_i32 : i32, i32
  }
}

</mosaic_0001>

<llo_original>
// kernel: tpu_custom_call.1
$region0: #{tpu_custom_call.1}
  #allocation0 [shape = 'u32[]', space=smem, size = 0x4, offset = 0x4, fixed_abs, tag = 'smem constant byte address 0x4 - core index']
  #allocation1 [shape = 'u32[72,128]{1,0:T(1,128)}', space=vmem, size = 0x9000, scoped, tag = 'internal scratch']
  %s0 = inlined_call_operand.hbm [shape: bf16[8,64], index: 0, kind: input, shape index: {}]
  %s1 = inlined_call_operand.hbm [shape: bf16[64,128], index: 1, kind: input, shape index: {}]
  %s2 = inlined_call_operand.vmem [shape: f32[1,128], index: 2, kind: input, shape index: {}]
  %s3 = inlined_call_operand.hbm [shape: bf16[128,128], index: 3, kind: input, shape index: {}]
  %s4 = inlined_call_operand.vmem [shape: f32[1,128], index: 4, kind: input, shape index: {}]
  %s5 = inlined_call_operand.hbm [shape: bf16[128,128], index: 5, kind: input, shape index: {}]
  %s6 = inlined_call_operand.vmem [shape: f32[1,128], index: 6, kind: input, shape index: {}]
  %s7 = inlined_call_operand.hbm [shape: f32[8,128], index: 7, kind: output, shape index: {}]
  %s8 = sld [smem:[#allocation0]]
  $region54: #{tpu_custom_call.1} parent=0
    _
  %s10 = ssub.s32 1, %s8
  %s11 = scalar_select 0, %s10, %s8
  $region1: #{tpu_custom_call.1} parent=0
    #allocation2 [shape = 'u8[2048]{0}', space=vmem, size = 0x800, scoped, tag = 'input window, operand 0, single buffered']
    #allocation3 [shape = 's32[1]{0}', space=sflag, size = 0x4, scoped, tag = 'scoped memory for tpu_custom_call.1']
    #allocation4 [shape = 's32[1]{0}', space=sflag, size = 0x4, scoped, tag = 'scoped memory for tpu_custom_call.1']
    #allocation5 [shape = 'u8[16384]{0}', space=vmem, size = 0x4000, scoped, tag = 'input window, operand 1, single buffered']
    #allocation6 [shape = 's32[1]{0}', space=sflag, size = 0x4, scoped, tag = 'scoped memory for tpu_custom_call.1']
    #allocation7 [shape = 'u8[32768]{0}', space=vmem, size = 0x8000, scoped, tag = 'input window, operand 3, single buffered']
    #allocation8 [shape = 'u8[32768]{0}', space=vmem, size = 0x8000, scoped, tag = 'input window, operand 5, single buffered']
    #allocation9 [shape = 's32[1]{0}', space=sflag, size = 0x4, scoped, tag = 'scoped memory for tpu_custom_call.1']
    #allocation10 [shape = 'u8[4096]{0}', space=vmem, size = 0x1000, scoped, tag = 'output window, operand 0, single buffered']
    %12 = vsyncpa [#allocation3], 0
    %13 = vsyncpa [#allocation6], 0
    %14 = vsyncpa [#allocation9], 0
    %15 = vsyncpa [#allocation4], 0
    // Predicated region
    $region2: #{tpu_custom_call.1} parent=1 // pred_check
      _
    $region3: #{tpu_custom_call.1} parent=1 // pred_check_branch
      %17 = sbr.rel (0) target = $region5
    $region4: #{tpu_custom_call.1} parent=1 // pred_region
      %19 = vsyncadd [#allocation3], 0
      %s21 = sshll.u32 %s0, 4
      %s22 = int_to_ptr.hbm [resolvable:$true] %s21
      %s23 = sshll.u32 [#allocation2], 4
      %s24 = int_to_ptr.vmem [resolvable:$true] %s23
      %26 = dma.hbm_to_vmem [thread:$0]  %s22, 64, %s24, [#allocation3]
    $region5: #{tpu_custom_call.1} parent=1 // pred_fallthru
      _
    // Predicated region
    $region6: #{tpu_custom_call.1} parent=1 // pred_check
      _
    $region7: #{tpu_custom_call.1} parent=1 // pred_check_branch
      %28 = sbr.rel (0) target = $region9
    $region8: #{tpu_custom_call.1} parent=1 // pred_region
      %30 = vsyncadd [#allocation6], 0
      %s31 = sshll.u32 %s1, 4
      %s32 = int_to_ptr.hbm [resolvable:$true] %s31
      %s33 = sshll.u32 [#allocation5], 4
      %s34 = int_to_ptr.vmem [resolvable:$true] %s33
      %39 = dma.hbm_to_vmem [thread:$0]  %s32, 512, %s34, [#allocation6], 64, 64, 4
    $region9: #{tpu_custom_call.1} parent=1 // pred_fallthru
      _
    // Predicated region
    $region10: #{tpu_custom_call.1} parent=1 // pred_check
      _
    $region11: #{tpu_custom_call.1} parent=1 // pred_check_branch
      %41 = sbr.rel (0) target = $region13
    $region12: #{tpu_custom_call.1} parent=1 // pred_region
      _
    $region13: #{tpu_custom_call.1} parent=1 // pred_fallthru
      _
    // Predicated region
    $region14: #{tpu_custom_call.1} parent=1 // pred_check
      _
    $region15: #{tpu_custom_call.1} parent=1 // pred_check_branch
      %43 = sbr.rel (0) target = $region17
    $region16: #{tpu_custom_call.1} parent=1 // pred_region
      %45 = vsyncadd [#allocation6], 0
      %s46 = sshll.u32 %s3, 4
      %s47 = int_to_ptr.hbm [resolvable:$true] %s46
      %s48 = sshll.u32 [#allocation7], 4
      %s49 = int_to_ptr.vmem [resolvable:$true] %s48
      %54 = dma.hbm_to_vmem [thread:$0]  %s47, 1024, %s49, [#allocation6], 64, 64, 4
    $region17: #{tpu_custom_call.1} parent=1 // pred_fallthru
      _
    // Predicated region
    $region18: #{tpu_custom_call.1} parent=1 // pred_check
      _
    $region19: #{tpu_custom_call.1} parent=1 // pred_check_branch
      %56 = sbr.rel (0) target = $region21
    $region20: #{tpu_custom_call.1} parent=1 // pred_region
      _
    $region21: #{tpu_custom_call.1} parent=1 // pred_fallthru
      _
    // Predicated region
    $region22: #{tpu_custom_call.1} parent=1 // pred_check
      _
    $region23: #{tpu_custom_call.1} parent=1 // pred_check_branch
      %58 = sbr.rel (0) target = $region25
    $region24: #{tpu_custom_call.1} parent=1 // pred_region
      %60 = vsyncadd [#allocation9], 0
      %s61 = sshll.u32 %s5, 4
      %s62 = int_to_ptr.hbm [resolvable:$true] %s61
      %s63 = sshll.u32 [#allocation8], 4
      %s64 = int_to_ptr.vmem [resolvable:$true] %s63
      %69 = dma.hbm_to_vmem [thread:$0]  %s62, 1024, %s64, [#allocation9], 64, 64, 4
    $region25: #{tpu_custom_call.1} parent=1 // pred_fallthru
      _
    // Predicated region
    $region26: #{tpu_custom_call.1} parent=1 // pred_check
      _
    $region27: #{tpu_custom_call.1} parent=1 // pred_check_branch
      %71 = sbr.rel (0) target = $region29
    $region28: #{tpu_custom_call.1} parent=1 // pred_region
      _
    $region29: #{tpu_custom_call.1} parent=1 // pred_fallthru
      _
    // Predicated region
    $region30: #{tpu_custom_call.1} parent=1 // pred_check
      _
    $region31: #{tpu_custom_call.1} parent=1 // pred_check_branch
      %73 = sbr.rel (0) target = $region33
    $region32: #{tpu_custom_call.1} parent=1 // pred_region
      %75 = dma.done [#allocation3], 64
    $region33: #{tpu_custom_call.1} parent=1 // pred_fallthru
      _
    // Predicated region
    $region34: #{tpu_custom_call.1} parent=1 // pred_check
      _
    $region35: #{tpu_custom_call.1} parent=1 // pred_check_branch
      %77 = sbr.rel (0) target = $region37
    $region36: #{tpu_custom_call.1} parent=1 // pred_region
      %79 = dma.done [#allocation6], 512
    $region37: #{tpu_custom_call.1} parent=1 // pred_fallthru
      _
    // Predicated region
    $region38: #{tpu_custom_call.1} parent=1 // pred_check
      _
    $region39: #{tpu_custom_call.1} parent=1 // pred_check_branch
      %81 = sbr.rel (0) target = $region41
    $region40: #{tpu_custom_call.1} parent=1 // pred_region
      %83 = dma.done [#allocation6], 1024
    $region41: #{tpu_custom_call.1} parent=1 // pred_fallthru
      _
    // Predicated region
    $region42: #{tpu_custom_call.1} parent=1 // pred_check
      _
    $region43: #{tpu_custom_call.1} parent=1 // pred_check_branch
      %85 = sbr.rel (0) target = $region45
    $region44: #{tpu_custom_call.1} parent=1 // pred_region
      %87 = dma.done [#allocation9], 1024
    $region45: #{tpu_custom_call.1} parent=1 // pred_fallthru
      _
    %v89 = vld [vmem:[#allocation2] sm:$0xf]
    %v90 = vld [vmem:[#allocation5] sm:$0xf]
    %v91 = vld [vmem:[#allocation5 + $0x4] sm:$0xf]
    %v92 = vld [vmem:[#allocation5 + $0x8] sm:$0xf]
    %v93 = vld [vmem:[#allocation5 + $0xc] sm:$0xf]
    %v94 = vld [vmem:[#allocation5 + $0x10] sm:$0xf]
    %v95 = vld [vmem:[#allocation5 + $0x14] sm:$0xf]
    %v96 = vld [vmem:[#allocation5 + $0x18] sm:$0xf]
    %v97 = vld [vmem:[#allocation5 + $0x1c] sm:$0xf]
    %v98 = vld [vmem:[%s2] sm:$0x1]
    %v100 = vperm.slane %v98, 0
    %v110 = vunpack.c.l.b16 %v90
    %v111 = vunpack.c.l.b16 %v91
    %v112 = vunpack.c.l.b16 %v92
    %v113 = vunpack.c.l.b16 %v93
    %v114 = vunpack.c.l.b16 %v94
    %v115 = vunpack.c.l.b16 %v95
    %v116 = vunpack.c.l.b16 %v96
    %v117 = vunpack.c.l.b16 %v97
    %v118 = vpack.c.b16 %v111, %v110
    %v119 = vpack.c.b16 %v113, %v112
    %v120 = vpack.c.b16 %v115, %v114
    %v121 = vpack.c.b16 %v117, %v116
    %vm126 = vcmask 523264
    %v128 = vsel %vm126, %v89, 0
    %130 = vmatpush.bf16.msra.mxu0 0
    %131 = vmatpush.bf16.msra.mxu0 0
    %132 = vmatpush.bf16.msra.mxu0 0
    %133 = vmatpush.bf16.msra.mxu0 0
    %134 = vmatpush.bf16.msra.mxu0 %v121
    %135 = vmatpush.bf16.msra.mxu0 %v120
    %136 = vmatpush.bf16.msra.mxu0 %v119
    %137 = vmatpush.bf16.msra.mxu0 %v118
    %138 = vmatmul.bf16.gmra.mxu0 %v128
    %v139 = vpop.f32.mrf.mxu0
    %v140 = vadd.f32 %v100, %v139
    %v141 = vpop.f32.mrf.mxu0
    %142 = vdwg.mxu0
    %v143 = vmax.f32 %v140, 0.0
    %v144 = vpack.c.bf16 %v143, %v143
    %v145 = vld [vmem:[#allocation7] sm:$0xf]
    %v146 = vld [vmem:[#allocation7 + $0x4] sm:$0xf]
    %v147 = vld [vmem:[#allocation7 + $0x8] sm:$0xf]
    %v148 = vld [vmem:[#allocation7 + $0xc] sm:$0xf]
    %v149 = vld [vmem:[#allocation7 + $0x10] sm:$0xf]
    %v150 = vld [vmem:[#allocation7 + $0x14] sm:$0xf]
    %v151 = vld [vmem:[#allocation7 + $0x18] sm:$0xf]
    %v152 = vld [vmem:[#allocation7 + $0x1c] sm:$0xf]
    %v153 = vld [vmem:[#allocation7 + $0x20] sm:$0xf]
    %v154 = vld [vmem:[#allocation7 + $0x24] sm:$0xf]
    %v155 = vld [vmem:[#allocation7 + $0x28] sm:$0xf]
    %v156 = vld [vmem:[#allocation7 + $0x2c] sm:$0xf]
    %v157 = vld [vmem:[#allocation7 + $0x30] sm:$0xf]
    %v158 = vld [vmem:[#allocation7 + $0x34] sm:$0xf]
    %v159 = vld [vmem:[#allocation7 + $0x38] sm:$0xf]
    %v160 = vld [vmem:[#allocation7 + $0x3c] sm:$0xf]
    %v161 = vld [vmem:[%s4] sm:$0x1]
    %v163 = vperm.slane %v161, 0
    %v181 = vunpack.c.l.b16 %v145
    %v182 = vunpack.c.l.b16 %v146
    %v183 = vunpack.c.l.b16 %v147
    %v184 = vunpack.c.l.b16 %v148
    %v185 = vunpack.c.l.b16 %v149
    %v186 = vunpack.c.l.b16 %v150
    %v187 = vunpack.c.l.b16 %v151
    %v188 = vunpack.c.l.b16 %v152
    %v189 = vunpack.c.l.b16 %v153
    %v190 = vunpack.c.l.b16 %v154
    %v191 = vunpack.c.l.b16 %v155
    %v192 = vunpack.c.l.b16 %v156
    %v193 = vunpack.c.l.b16 %v157
    %v194 = vunpack.c.l.b16 %v158
    %v195 = vunpack.c.l.b16 %v159
    %v196 = vunpack.c.l.b16 %v160
    %v197 = vpack.c.b16 %v182, %v181
    %v198 = vpack.c.b16 %v184, %v183
    %v199 = vpack.c.b16 %v186, %v185
    %v200 = vpack.c.b16 %v188, %v187
    %v201 = vpack.c.b16 %v190, %v189
    %v202 = vpack.c.b16 %v192, %v191
    %v203 = vpack.c.b16 %v194, %v193
    %v204 = vpack.c.b16 %v196, %v195
    %213 = vmatpush.bf16.msra.mxu0 %v204
    %214 = vmatpush.bf16.msra.mxu0 %v203
    %215 = vmatpush.bf16.msra.mxu0 %v202
    %216 = vmatpush.bf16.msra.mxu0 %v201
    %217 = vmatpush.bf16.msra.mxu0 %v200
    %218 = vmatpush.bf16.msra.mxu0 %v199
    %219 = vmatpush.bf16.msra.mxu0 %v198
    %220 = vmatpush.bf16.msra.mxu0 %v197
    %221 = vmatmul.bf16.gmra.mxu0 %v144
    %v222 = vpop.f32.mrf.mxu0
    %v223 = vadd.f32 %v163, %v222
    %v224 = vpop.f32.mrf.mxu0
    %225 = vdwg.mxu0
    %v226 = vmax.f32 %v223, 0.0
    %v227 = vpack.c.bf16 %v226, %v226
    %v228 = vld [vmem:[#allocation8] sm:$0xf]
    %v229 = vld [vmem:[#allocation8 + $0x4] sm:$0xf]
    %v230 = vld [vmem:[#allocation8 + $0x8] sm:$0xf]
    %v231 = vld [vmem:[#allocation8 + $0xc] sm:$0xf]
    %v232 = vld [vmem:[#allocation8 + $0x10] sm:$0xf]
    %v233 = vld [vmem:[#allocation8 + $0x14] sm:$0xf]
    %v234 = vld [vmem:[#allocation8 + $0x18] sm:$0xf]
    %v235 = vld [vmem:[#allocation8 + $0x1c] sm:$0xf]
    %v236 = vld [vmem:[#allocation8 + $0x20] sm:$0xf]
    %v237 = vld [vmem:[#allocation8 + $0x24] sm:$0xf]
    %v238 = vld [vmem:[#allocation8 + $0x28] sm:$0xf]
    %v239 = vld [vmem:[#allocation8 + $0x2c] sm:$0xf]
    %v240 = vld [vmem:[#allocation8 + $0x30] sm:$0xf]
    %v241 = vld [vmem:[#allocation8 + $0x34] sm:$0xf]
    %v242 = vld [vmem:[#allocation8 + $0x38] sm:$0xf]
    %v243 = vld [vmem:[#allocation8 + $0x3c] sm:$0xf]
    %v244 = vld [vmem:[%s6] sm:$0x1]
    %v246 = vperm.slane %v244, 0
    %v264 = vunpack.c.l.b16 %v228
    %v265 = vunpack.c.l.b16 %v229
    %v266 = vunpack.c.l.b16 %v230
    %v267 = vunpack.c.l.b16 %v231
    %v268 = vunpack.c.l.b16 %v232
    %v269 = vunpack.c.l.b16 %v233
    %v270 = vunpack.c.l.b16 %v234
    %v271 = vunpack.c.l.b16 %v235
    %v272 = vunpack.c.l.b16 %v236
    %v273 = vunpack.c.l.b16 %v237
    %v274 = vunpack.c.l.b16 %v238
    %v275 = vunpack.c.l.b16 %v239
    %v276 = vunpack.c.l.b16 %v240
    %v277 = vunpack.c.l.b16 %v241
    %v278 = vunpack.c.l.b16 %v242
    %v279 = vunpack.c.l.b16 %v243
    %v280 = vpack.c.b16 %v265, %v264
    %v281 = vpack.c.b16 %v267, %v266
    %v282 = vpack.c.b16 %v269, %v268
    %v283 = vpack.c.b16 %v271, %v270
    %v284 = vpack.c.b16 %v273, %v272
    %v285 = vpack.c.b16 %v275, %v274
    %v286 = vpack.c.b16 %v277, %v276
    %v287 = vpack.c.b16 %v279, %v278
    %296 = vmatpush.bf16.msra.mxu0 %v287
    %297 = vmatpush.bf16.msra.mxu0 %v286
    %298 = vmatpush.bf16.msra.mxu0 %v285
    %299 = vmatpush.bf16.msra.mxu0 %v284
    %300 = vmatpush.bf16.msra.mxu0 %v283
    %301 = vmatpush.bf16.msra.mxu0 %v282
    %302 = vmatpush.bf16.msra.mxu0 %v281
    %303 = vmatpush.bf16.msra.mxu0 %v280
    %304 = vmatmul.bf16.gmra.mxu0 %v227
    %v305 = vpop.f32.mrf.mxu0
    %v306 = vadd.f32 %v246, %v305
    %v307 = vpop.f32.mrf.mxu0
    %308 = vdwg.mxu0
    %309 = vst [vmem:[#allocation10] sm:$0xff] %v306
    // Predicated region
    $region46: #{tpu_custom_call.1} parent=1 // pred_check
      _
    $region47: #{tpu_custom_call.1} parent=1 // pred_check_branch
      %311 = sbr.rel (0) target = $region49
    $region48: #{tpu_custom_call.1} parent=1 // pred_region
      %313 = vsyncadd [#allocation4], 0
      %s315 = sshll.u32 [#allocation10], 4
      %s316 = int_to_ptr.vmem [resolvable:$true] %s315
      %s317 = sshll.u32 %s7, 4
      %s318 = int_to_ptr.hbm [resolvable:$true] %s317
      %320 = dma.vmem_to_hbm [thread:$0]  %s316, 128, %s318, [#allocation4]
    $region49: #{tpu_custom_call.1} parent=1 // pred_fallthru
      _
    // Predicated region
    $region50: #{tpu_custom_call.1} parent=1 // pred_check
      _
    $region51: #{tpu_custom_call.1} parent=1 // pred_check_branch
      %322 = sbr.rel (0) target = $region53
    $region52: #{tpu_custom_call.1} parent=1 // pred_region
      %324 = dma.done [#allocation4], 128
    $region53: #{tpu_custom_call.1} parent=1 // pred_fallthru
      _
    %325 = vsyncpa [#allocation3], 1
    %326 = vsyncpa [#allocation6], 1
    %327 = vsyncpa [#allocation9], 1
    %328 = vsyncpa [#allocation4], 1

</llo_original>
